<compile_context>
chip_gen: v5e
topology: v5e:2x2
jax: 0.10.0
libtpu: 0.0.40
codegen_flags: <defaults>
</compile_context>

<pallas_src>
import jax
import jax.numpy as jnp
from jax.experimental import pallas as pl
from jax.experimental.pallas import tpu as pltpu


def _add_bias_kernel(x_ref, b_ref, o_ref):
    # b_ref block is either (1, cols)  -> broadcast over rows (2-D input path)
    #                    or (rows, 1)  -> broadcast over cols (4-D input path)
    o_ref[...] = x_ref[...] + b_ref[...]


def _pick_row_tile(rows, cols, itemsize, vmem_budget_bytes=20 * 1024 * 1024):
    """Rows per tile so that double-buffered input + output tiles fit the budget."""
    # 2 (double buffer) * 2 (in + out) = 4 resident copies of a (TR, cols) tile.
    max_rows = max(8, vmem_budget_bytes // (4 * max(cols, 1) * itemsize))
    tr = min(rows, 1024, max_rows)
    if tr >= rows:
        return rows                       # full-extent block is always legal
    return max(8, (tr // 8) * 8)          # tiled block: multiple of 8 sublanes


def _add_bias_2d_call(x2, b2):
    """x2: (R, C) f32; b2: (1, C) column-bias or (R, 1) row-bias."""
    R, C = x2.shape
    itemsize = jnp.dtype(x2.dtype).itemsize
    TR = _pick_row_tile(R, C, itemsize)
    grid = (pl.cdiv(R, TR),)

    if b2.shape[0] == 1:
        # Column bias: one (1, C) row, kept VMEM-resident across all grid steps.
        b_spec = pl.BlockSpec((1, C), lambda i: (0, 0))
    else:
        # Row bias: tiled along rows together with x.
        b_spec = pl.BlockSpec((TR, 1), lambda i: (i, 0))

    cost = pl.CostEstimate(
        flops=R * C,
        transcendentals=0,
        bytes_accessed=(2 * R * C + b2.size) * itemsize,
    )

    return pl.pallas_call(
        _add_bias_kernel,
        out_shape=jax.ShapeDtypeStruct((R, C), x2.dtype),
        grid=grid,
        in_specs=[
            pl.BlockSpec((TR, C), lambda i: (i, 0)),
            b_spec,
        ],
        out_specs=pl.BlockSpec((TR, C), lambda i: (i, 0)),
        compiler_params=pltpu.CompilerParams(
            dimension_semantics=("parallel",),
            vmem_limit_bytes=32 * 1024 * 1024,
        ),
        cost_estimate=cost,
    )(x2, b2)


def add_bias_forward(x, bias_param):
    """Forward of AddBias.

    x: (B, F) or (B, C, H, W) float32
    bias_param: (F, 1) float32   (matches nn.Parameter(bias.unsqueeze(1)))
    """
    bias = bias_param.reshape(-1)  # (F,)

    if x.ndim == 2:
        B, F = x.shape
        assert F == bias.shape[0]
        return _add_bias_2d_call(x, bias.reshape(1, F))

    if x.ndim == 4:
        B, C, H, W = x.shape
        assert C == bias.shape[0]
        # View as (B*C, H*W): lane dim = H*W (lane-dense for typical spatial sizes);
        # bias becomes a tiny per-row column broadcast along lanes.
        x2 = x.reshape(B * C, H * W)
        bias_rows = jnp.tile(bias, B).reshape(B * C, 1)
        out2 = _add_bias_2d_call(x2, bias_rows)
        return out2.reshape(B, C, H, W)

    raise ValueError("AddBias expects a 2-D or 4-D input, got ndim=%d" % x.ndim)


if __name__ == "__main__":
    key = jax.random.PRNGKey(0)
    k_bias, k_x4, k_x2 = jax.random.split(key, 3)

    num_features = 4
    # PyTorch stores the bias as (F, 1) via bias.unsqueeze(1).
    bias_param = jax.random.normal(k_bias, (num_features, 1), jnp.float32)

    # 4-D branch: (B, C, H, W) + bias.view(1, -1, 1, 1)
    x4 = jax.random.normal(k_x4, (2, num_features, 16, 16), jnp.float32)
    out4 = jax.block_until_ready(add_bias_forward(x4, bias_param))
    ref4 = x4 + bias_param.reshape(1, num_features, 1, 1)
    assert out4.shape == x4.shape
    assert jnp.allclose(out4, ref4, atol=1e-6, rtol=1e-6)

    # 2-D branch: (B, F) + bias.view(1, -1)
    x2 = jax.random.normal(k_x2, (2, num_features), jnp.float32)
    out2 = jax.block_until_ready(add_bias_forward(x2, bias_param))
    ref2 = x2 + bias_param.reshape(1, num_features)
    assert out2.shape == x2.shape
    assert jnp.allclose(out2, ref2, atol=1e-6, rtol=1e-6)

    print("KERNEL_OK")
</pallas_src>

<mosaic_0001>
module attributes {stable_mosaic.version = 11 : i64} {
  func.func @_add_bias_kernel(%arg0: i32, %arg1: memref<8x256xf32, #tpu.memory_space<vmem>>, %arg2: memref<8x1xf32, #tpu.memory_space<vmem>>, %arg3: memref<8x256xf32, #tpu.memory_space<vmem>>) attributes {dimension_semantics = [#tpu.dimension_semantics<parallel>], iteration_bounds = array<i64: 1>, scalar_prefetch = 0 : i64, scratch_operands = 0 : i64, tpu.core_type = #tpu.core_type<tc>, window_params = [{transform_indices = @transform_0, window_bounds = array<i64: 8, 256>}, {transform_indices = @transform_1, window_bounds = array<i64: 8, 1>}, {transform_indices = @transform_2, window_bounds = array<i64: 8, 256>}]} {
    %c0 = arith.constant 0 : index
    %c0_0 = arith.constant 0 : index
    %0 = vector.load %arg1[%c0, %c0_0] : memref<8x256xf32, #tpu.memory_space<vmem>>, vector<8x256xf32>
    %c0_1 = arith.constant 0 : index
    %c0_2 = arith.constant 0 : index
    %1 = vector.load %arg2[%c0_1, %c0_2] : memref<8x1xf32, #tpu.memory_space<vmem>>, vector<8x1xf32>
    %2 = vector.broadcast %1 : vector<8x1xf32> to vector<8x256xf32>
    %3 = arith.addf %0, %2 : vector<8x256xf32>
    %c0_3 = arith.constant 0 : index
    %c0_4 = arith.constant 0 : index
    %4 = vector.load %arg3[%c0_3, %c0_4] : memref<8x256xf32, #tpu.memory_space<vmem>>, vector<8x256xf32>
    tpu.vector_store %arg3[%c0_3, %c0_4], %3 {strides = array<i32>} : memref<8x256xf32, #tpu.memory_space<vmem>>, vector<8x256xf32>,
    return
  }
  func.func @transform_0(%arg0: i32) -> (i32, i32) {
    %c0_i32 = arith.constant 0 : i32
    %c0_i32_0 = arith.constant 0 : i32
    return %arg0, %c0_i32 : i32, i32
  }
  func.func @transform_1(%arg0: i32) -> (i32, i32) {
    %c0_i32 = arith.constant 0 : i32
    %c0_i32_0 = arith.constant 0 : i32
    return %arg0, %c0_i32 : i32, i32
  }
  func.func @transform_2(%arg0: i32) -> (i32, i32) {
    %c0_i32 = arith.constant 0 : i32
    %c0_i32_0 = arith.constant 0 : i32
    return %arg0, %c0_i32 : i32, i32
  }
}

</mosaic_0001>

<llo_original>
// kernel: tpu_custom_call.1
$region0: #{tpu_custom_call.1}
  #allocation0 [shape = 'u32[]', space=smem, size = 0x4, offset = 0x4, fixed_abs, tag = 'smem constant byte address 0x4 - core index']
  #allocation1 [shape = 'u32[72,128]{1,0:T(1,128)}', space=vmem, size = 0x9000, scoped, tag = 'internal scratch']
  %s0 = inlined_call_operand.hbm [shape: f32[8,256], index: 0, kind: input, shape index: {}]
  %s1 = inlined_call_operand.vmem [shape: f32[8,1], index: 1, kind: input, shape index: {}]
  %s2 = inlined_call_operand.hbm [shape: f32[8,256], index: 2, kind: output, shape index: {}]
  %s3 = sld [smem:[#allocation0]]
  $region22: #{tpu_custom_call.1} parent=0
    _
  %s5 = ssub.s32 1, %s3
  %s6 = scalar_select 0, %s5, %s3
  $region1: #{tpu_custom_call.1} parent=0
    #allocation2 [shape = 'u8[8192]{0}', space=vmem, size = 0x2000, scoped, tag = 'input window, operand 0, single buffered']
    #allocation3 [shape = 's32[1]{0}', space=sflag, size = 0x4, scoped, tag = 'scoped memory for tpu_custom_call.1']
    #allocation4 [shape = 's32[1]{0}', space=sflag, size = 0x4, scoped, tag = 'scoped memory for tpu_custom_call.1']
    #allocation5 [shape = 'u8[8192]{0}', space=vmem, size = 0x2000, scoped, tag = 'output window, operand 0, single buffered']
    %7 = vsyncpa [#allocation3], 0
    %8 = vsyncpa [#allocation4], 0
    // Predicated region
    $region2: #{tpu_custom_call.1} parent=1 // pred_check
      _
    $region3: #{tpu_custom_call.1} parent=1 // pred_check_branch
      %10 = sbr.rel (0) target = $region5
    $region4: #{tpu_custom_call.1} parent=1 // pred_region
      %12 = vsyncadd [#allocation3], 0
      %s14 = sshll.u32 %s0, 4
      %s15 = int_to_ptr.hbm [resolvable:$true] %s14
      %s16 = sshll.u32 [#allocation2], 4
      %s17 = int_to_ptr.vmem [resolvable:$true] %s16
      %19 = dma.hbm_to_vmem [thread:$0]  %s15, 256, %s17, [#allocation3]
    $region5: #{tpu_custom_call.1} parent=1 // pred_fallthru
      _
    // Predicated region
    $region6: #{tpu_custom_call.1} parent=1 // pred_check
      _
    $region7: #{tpu_custom_call.1} parent=1 // pred_check_branch
      %21 = sbr.rel (0) target = $region9
    $region8: #{tpu_custom_call.1} parent=1 // pred_region
      _
    $region9: #{tpu_custom_call.1} parent=1 // pred_fallthru
      _
    // Predicated region
    $region10: #{tpu_custom_call.1} parent=1 // pred_check
      _
    $region11: #{tpu_custom_call.1} parent=1 // pred_check_branch
      %23 = sbr.rel (0) target = $region13
    $region12: #{tpu_custom_call.1} parent=1 // pred_region
      %25 = dma.done [#allocation3], 256
    $region13: #{tpu_custom_call.1} parent=1 // pred_fallthru
      _
    %v26 = vld [vmem:[#allocation2] sm:$0xff]
    %v27 = vld [vmem:[#allocation2 + $0x8] sm:$0xff]
    %v28 = vld [vmem:[%s1] sm:$0xff]
    %30 = vset.pattern.permute.xlu0 0
    %31 = vperm.xlu0 %30, %v28
    %v32 = vpop.permute.xlu0 %31
    %v34 = vadd.f32 %v26, %v32
    %v35 = vadd.f32 %v27, %v32
    %36 = vst [vmem:[#allocation5] sm:$0xff] %v34
    %37 = vst [vmem:[#allocation5 + $0x8] sm:$0xff] %v35
    // Predicated region
    $region14: #{tpu_custom_call.1} parent=1 // pred_check
      _
    $region15: #{tpu_custom_call.1} parent=1 // pred_check_branch
      %39 = sbr.rel (0) target = $region17
    $region16: #{tpu_custom_call.1} parent=1 // pred_region
      %41 = vsyncadd [#allocation4], 0
      %s43 = sshll.u32 [#allocation5], 4
      %s44 = int_to_ptr.vmem [resolvable:$true] %s43
      %s45 = sshll.u32 %s2, 4
      %s46 = int_to_ptr.hbm [resolvable:$true] %s45
      %48 = dma.vmem_to_hbm [thread:$0]  %s44, 256, %s46, [#allocation4]
    $region17: #{tpu_custom_call.1} parent=1 // pred_fallthru
      _
    // Predicated region
    $region18: #{tpu_custom_call.1} parent=1 // pred_check
      _
    $region19: #{tpu_custom_call.1} parent=1 // pred_check_branch
      %50 = sbr.rel (0) target = $region21
    $region20: #{tpu_custom_call.1} parent=1 // pred_region
      %52 = dma.done [#allocation4], 256
    $region21: #{tpu_custom_call.1} parent=1 // pred_fallthru
      _
    %53 = vsyncpa [#allocation3], 1
    %54 = vsyncpa [#allocation4], 1

</llo_original>
